<compile_context>
chip_gen: v6e
topology: v6e:2x2x1
jax: 0.10.0
libtpu: 0.0.40
codegen_flags: <defaults>
</compile_context>

<pallas_src>
import jax
import jax.numpy as jnp
from jax.experimental import pallas as pl
from jax.experimental.pallas import tpu as pltpu

BN_EPS = 1e-5
GIN_EPS1 = 0.0   # GINConv default eps (both layers; must stay equal for the A' fold)
LANE = 128
NEG = -1e30      # mask value for padded class columns
PRM_ROWS = 16    # packed-parameter tile rows (9 used, padded to sublane multiple)


def gin_kernel(xw1_ref, a_ref, p_ref, prm_ref,
               w1b_ref, w2a_ref, w2b_ref, wl_ref,
               out_ref):
    a = a_ref[...]                      # bf16 [N, N], already contains (1+eps)*I
    inv_n = 1.0 / a_ref.shape[0]        # static true node count (N is not padded)

    # Packed small parameters (static row slices, f32).
    b1a = prm_ref[0:1, :]
    b1b = prm_ref[1:2, :]
    g1 = prm_ref[2:3, :]
    be1 = prm_ref[3:4, :]
    b2a = prm_ref[4:5, :]
    b2b = prm_ref[5:6, :]
    g2 = prm_ref[6:7, :]
    be2 = prm_ref[7:8, :]
    bl = prm_ref[8:9, :]                # padded class columns carry -1e30

    # ---- GINConv 1: mlp1(A' @ x) with Linear(2,H) pre-folded: A'@(x@W1a)+b1a ----
    h = jnp.dot(a, xw1_ref[...], preferred_element_type=jnp.float32) + b1a
    h = jnp.maximum(h, 0.0)
    h = jnp.dot(h.astype(jnp.bfloat16), w1b_ref[...],
                preferred_element_type=jnp.float32) + b1b
    # One-pass BatchNorm1d (training-mode biased variance), folded scale/shift, f32.
    mean = jnp.sum(h, axis=0, keepdims=True) * inv_n
    ex2 = jnp.sum(h * h, axis=0, keepdims=True) * inv_n
    var = jnp.maximum(ex2 - mean * mean, 0.0)
    scale = g1 * jax.lax.rsqrt(var + BN_EPS)
    shift = be1 - mean * scale
    h = jnp.maximum(h * scale + shift, 0.0)           # BN + F.relu after conv1

    # ---- GINConv 2: mlp2(A' @ h) ----
    agg2 = jnp.dot(a, h.astype(jnp.bfloat16), preferred_element_type=jnp.float32)
    h2 = jnp.dot(agg2.astype(jnp.bfloat16), w2a_ref[...],
                 preferred_element_type=jnp.float32) + b2a
    h2 = jnp.maximum(h2, 0.0)
    h2 = jnp.dot(h2.astype(jnp.bfloat16), w2b_ref[...],
                 preferred_element_type=jnp.float32) + b2b
    mean2 = jnp.sum(h2, axis=0, keepdims=True) * inv_n
    ex22 = jnp.sum(h2 * h2, axis=0, keepdims=True) * inv_n
    var2 = jnp.maximum(ex22 - mean2 * mean2, 0.0)
    scale2 = g2 * jax.lax.rsqrt(var2 + BN_EPS)
    shift2 = be2 - mean2 * scale2
    h2 = jnp.maximum(h2 * scale2 + shift2, 0.0)       # BN + F.relu after conv2

    # ---- global_add_pool + classifier + log_softmax (lane-dense padded width) ----
    pooled = jnp.dot(p_ref[...], h2.astype(jnp.bfloat16),
                     preferred_element_type=jnp.float32)
    logits = jnp.dot(pooled.astype(jnp.bfloat16), wl_ref[...],
                     preferred_element_type=jnp.float32) + bl
    m = jnp.max(logits, axis=1, keepdims=True)        # padded cols carry -1e30 bias
    lse = m + jnp.log(jnp.sum(jnp.exp(logits - m), axis=1, keepdims=True))
    out_ref[...] = logits - lse                       # full unmasked (8,128) store


def _pad2(a, rows, cols, val=0.0):
    return jnp.pad(a, ((0, rows - a.shape[0]), (0, cols - a.shape[1])),
                   constant_values=val)


def gin_forward(x, edge_index, batch, params, num_graphs):
    """x: [N, F_in] float; edge_index: [2, E] int32 (src, dst); batch: [N] int32."""
    n, _ = x.shape
    hidden = params["w1b"].shape[0]
    num_classes = params["wl"].shape[1]
    assert hidden <= LANE and num_classes <= LANE
    h_pad = LANE
    c_pad = LANE
    g_pad = max(8, ((num_graphs + 7) // 8) * 8)       # unmasked (8,128) output store

    src, dst = edge_index[0], edge_index[1]
    # A' = A + (1+eps)*I : neighbor-sum + self term in one MXU matmul.
    # (Shared across both layers: valid only while the two GINConv eps are equal.)
    adj = jnp.zeros((n, n), jnp.float32).at[dst, src].add(1.0)
    adj = adj + (1.0 + GIN_EPS1) * jnp.eye(n, dtype=jnp.float32)
    # Pooling matrix: P[g, i] = 1 iff batch[i] == g (padded graph rows stay zero).
    pool = (batch[None, :] ==
            jnp.arange(g_pad, dtype=batch.dtype)[:, None]).astype(jnp.float32)

    bf = jnp.bfloat16
    # Fold mlp1's first Linear: xw1 = x @ W1a, done by XLA ([N,2]x[2,H] is tiny);
    # bias b1a is added AFTER aggregation inside the kernel (associativity).
    xw1 = x.astype(jnp.float32) @ params["w1a"]
    xw1_b = _pad2(xw1, n, h_pad).astype(bf)
    adj_b = adj.astype(bf)                            # 0/1/2 values: exact in bf16
    pool_b = pool.astype(bf)

    w1b = _pad2(params["w1b"], h_pad, h_pad).astype(bf)
    w2a = _pad2(params["w2a"], h_pad, h_pad).astype(bf)
    w2b = _pad2(params["w2b"], h_pad, h_pad).astype(bf)
    wl = _pad2(params["wl"], h_pad, c_pad).astype(bf)

    # Pack all small f32 vectors into one [16,128] tile (one input, one DMA).
    bl_row = jnp.full((LANE,), NEG, jnp.float32).at[:num_classes].set(params["bl"][0])
    prm = jnp.zeros((PRM_ROWS, LANE), jnp.float32)
    prm = prm.at[0, :hidden].set(params["b1a"][0])
    prm = prm.at[1, :hidden].set(params["b1b"][0])
    prm = prm.at[2, :hidden].set(params["g1"][0])
    prm = prm.at[3, :hidden].set(params["be1"][0])
    prm = prm.at[4, :hidden].set(params["b2a"][0])
    prm = prm.at[5, :hidden].set(params["b2b"][0])
    prm = prm.at[6, :hidden].set(params["g2"][0])
    prm = prm.at[7, :hidden].set(params["be2"][0])
    prm = prm.at[8, :].set(bl_row)

    inputs = (xw1_b, adj_b, pool_b, prm, w1b, w2a, w2b, wl)

    flops = (2 * n * n * h_pad            # A' @ xw1
             + 2 * n * h_pad * h_pad      # @ W1b
             + 2 * n * n * h_pad          # A' @ h
             + 2 * n * h_pad * h_pad      # @ W2a
             + 2 * n * h_pad * h_pad      # @ W2b
             + 2 * g_pad * n * h_pad      # pooling
             + 2 * g_pad * h_pad * c_pad) # classifier
    bytes_accessed = (sum(int(v.size) * v.dtype.itemsize for v in inputs)
                      + g_pad * c_pad * 4)
    transcendentals = 2 * h_pad + g_pad * c_pad + g_pad   # rsqrt rows + exp + log

    vmem = pl.BlockSpec(memory_space=pltpu.MemorySpace.VMEM)
    # 32 MiB scoped VMEM is ample at this size and safe on v7x (64 MiB physical);
    # raise toward ~100 MiB only on v5e/v6e if scaling N with the dense-A' path.
    out_pad = pl.pallas_call(
        gin_kernel,
        out_shape=jax.ShapeDtypeStruct((g_pad, c_pad), jnp.float32),
        in_specs=[vmem] * len(inputs),
        out_specs=vmem,
        cost_estimate=pl.CostEstimate(flops=flops,
                                      transcendentals=transcendentals,
                                      bytes_accessed=bytes_accessed),
        compiler_params=pltpu.CompilerParams(vmem_limit_bytes=32 * 1024 * 1024),
    )(*inputs)
    return out_pad[:num_graphs, :num_classes]


def init_params(key, f_in, hidden, num_classes):
    ks = jax.random.split(key, 6)
    scale = 0.1
    return {
        "w1a": scale * jax.random.normal(ks[0], (f_in, hidden), jnp.float32),
        "b1a": jnp.zeros((1, hidden), jnp.float32),
        "w1b": scale * jax.random.normal(ks[1], (hidden, hidden), jnp.float32),
        "b1b": jnp.zeros((1, hidden), jnp.float32),
        "g1": jnp.ones((1, hidden), jnp.float32),
        "be1": jnp.zeros((1, hidden), jnp.float32),
        "w2a": scale * jax.random.normal(ks[2], (hidden, hidden), jnp.float32),
        "b2a": jnp.zeros((1, hidden), jnp.float32),
        "w2b": scale * jax.random.normal(ks[3], (hidden, hidden), jnp.float32),
        "b2b": jnp.zeros((1, hidden), jnp.float32),
        "g2": jnp.ones((1, hidden), jnp.float32),
        "be2": jnp.zeros((1, hidden), jnp.float32),
        "wl": scale * jax.random.normal(ks[4], (hidden, num_classes), jnp.float32),
        "bl": jnp.zeros((1, num_classes), jnp.float32),
    }


if __name__ == "__main__":
    key = jax.random.PRNGKey(0)
    F_IN = 2            # module declares Linear(2, hidden)
    HIDDEN = 64
    NUM_CLASSES = 2
    NODES_PER_GRAPH = 8
    NUM_GRAPHS = 2
    N = NODES_PER_GRAPH * NUM_GRAPHS

    k_x, k_p = jax.random.split(key)
    x = jax.random.normal(k_x, (N, F_IN), jnp.float32)

    # Deterministic undirected ring graph inside each of the two graphs.
    src_list, dst_list = [], []
    for g in range(NUM_GRAPHS):
        base = g * NODES_PER_GRAPH
        for i in range(NODES_PER_GRAPH):
            u = base + i
            v = base + (i + 1) % NODES_PER_GRAPH
            src_list += [u, v]
            dst_list += [v, u]
    edge_index = jnp.array([src_list, dst_list], dtype=jnp.int32)
    batch = jnp.repeat(jnp.arange(NUM_GRAPHS, dtype=jnp.int32), NODES_PER_GRAPH)

    params = init_params(k_p, F_IN, HIDDEN, NUM_CLASSES)

    out = gin_forward(x, edge_index, batch, params, NUM_GRAPHS)
    out = jax.block_until_ready(out)
    assert out.shape == (NUM_GRAPHS, NUM_CLASSES)
    assert bool(jnp.all(jnp.isfinite(out)))
    print("KERNEL_OK")
</pallas_src>

<mosaic_0001>
module attributes {stable_mosaic.version = 11 : i64} {
  func.func @gin_kernel(%arg0: memref<16x128xbf16, #tpu.memory_space<vmem>>, %arg1: memref<16x16xbf16, #tpu.memory_space<vmem>>, %arg2: memref<8x16xbf16, #tpu.memory_space<vmem>>, %arg3: memref<16x128xf32, #tpu.memory_space<vmem>>, %arg4: memref<128x128xbf16, #tpu.memory_space<vmem>>, %arg5: memref<128x128xbf16, #tpu.memory_space<vmem>>, %arg6: memref<128x128xbf16, #tpu.memory_space<vmem>>, %arg7: memref<128x128xbf16, #tpu.memory_space<vmem>>, %arg8: memref<8x128xf32, #tpu.memory_space<vmem>>) attributes {dimension_semantics = [], scalar_prefetch = 0 : i64, scratch_operands = 0 : i64, tpu.core_type = #tpu.core_type<tc>} {
    %c0 = arith.constant 0 : index
    %c0_0 = arith.constant 0 : index
    %0 = vector.load %arg1[%c0, %c0_0] : memref<16x16xbf16, #tpu.memory_space<vmem>>, vector<16x16xbf16>
    %c0_1 = arith.constant 0 : index
    %c0_2 = arith.constant 0 : index
    %1 = vector.load %arg3[%c0_1, %c0_2] : memref<16x128xf32, #tpu.memory_space<vmem>>, vector<1x128xf32>
    %c1 = arith.constant 1 : index
    %c0_3 = arith.constant 0 : index
    %2 = vector.load %arg3[%c1, %c0_3] : memref<16x128xf32, #tpu.memory_space<vmem>>, vector<1x128xf32>
    %c2 = arith.constant 2 : index
    %c0_4 = arith.constant 0 : index
    %3 = vector.load %arg3[%c2, %c0_4] : memref<16x128xf32, #tpu.memory_space<vmem>>, vector<1x128xf32>
    %c3 = arith.constant 3 : index
    %c0_5 = arith.constant 0 : index
    %4 = vector.load %arg3[%c3, %c0_5] : memref<16x128xf32, #tpu.memory_space<vmem>>, vector<1x128xf32>
    %c4 = arith.constant 4 : index
    %c0_6 = arith.constant 0 : index
    %5 = vector.load %arg3[%c4, %c0_6] : memref<16x128xf32, #tpu.memory_space<vmem>>, vector<1x128xf32>
    %c5 = arith.constant 5 : index
    %c0_7 = arith.constant 0 : index
    %6 = vector.load %arg3[%c5, %c0_7] : memref<16x128xf32, #tpu.memory_space<vmem>>, vector<1x128xf32>
    %c6 = arith.constant 6 : index
    %c0_8 = arith.constant 0 : index
    %7 = vector.load %arg3[%c6, %c0_8] : memref<16x128xf32, #tpu.memory_space<vmem>>, vector<1x128xf32>
    %c7 = arith.constant 7 : index
    %c0_9 = arith.constant 0 : index
    %8 = vector.load %arg3[%c7, %c0_9] : memref<16x128xf32, #tpu.memory_space<vmem>>, vector<1x128xf32>
    %c8 = arith.constant 8 : index
    %c0_10 = arith.constant 0 : index
    %9 = vector.load %arg3[%c8, %c0_10] : memref<16x128xf32, #tpu.memory_space<vmem>>, vector<1x128xf32>
    %c0_11 = arith.constant 0 : index
    %c0_12 = arith.constant 0 : index
    %10 = vector.load %arg0[%c0_11, %c0_12] : memref<16x128xbf16, #tpu.memory_space<vmem>>, vector<16x128xbf16>
    %cst = arith.constant dense<0.000000e+00> : vector<16x128xf32>
    %11 = tpu.matmul %0, %10, %cst {dimension_numbers = #tpu.dot_dimension_numbers<[1], [0], [0], [1], [0, 0, 1, 1], [], []>} : vector<16x16xbf16>, vector<16x128xbf16>, vector<16x128xf32> -> vector<16x128xf32>
    %12 = vector.broadcast %1 : vector<1x128xf32> to vector<16x128xf32>
    %13 = arith.addf %11, %12 : vector<16x128xf32>
    %cst_13 = arith.constant 0.000000e+00 : f32
    %14 = vector.broadcast %cst_13 : f32 to vector<16x128xf32>
    %15 = arith.maximumf %13, %14 : vector<16x128xf32>
    %16 = arith.truncf %15 : vector<16x128xf32> to vector<16x128xbf16>
    %c0_14 = arith.constant 0 : index
    %c0_15 = arith.constant 0 : index
    %17 = vector.load %arg4[%c0_14, %c0_15] : memref<128x128xbf16, #tpu.memory_space<vmem>>, vector<128x128xbf16>
    %cst_16 = arith.constant dense<0.000000e+00> : vector<16x128xf32>
    %18 = tpu.matmul %16, %17, %cst_16 {dimension_numbers = #tpu.dot_dimension_numbers<[1], [0], [0], [1], [0, 0, 1, 1], [], []>} : vector<16x128xbf16>, vector<128x128xbf16>, vector<16x128xf32> -> vector<16x128xf32>
    %19 = vector.broadcast %2 : vector<1x128xf32> to vector<16x128xf32>
    %20 = arith.addf %18, %19 : vector<16x128xf32>
    %cst_17 = arith.constant dense<0.000000e+00> : vector<128xf32>
    %21 = vector.multi_reduction <add>, %20, %cst_17 [0] : vector<16x128xf32> to vector<128xf32>
    %22 = vector.shape_cast %21 : vector<128xf32> to vector<1x128xf32>
    %cst_18 = arith.constant 6.250000e-02 : f32
    %23 = vector.broadcast %cst_18 : f32 to vector<1x128xf32>
    %24 = arith.mulf %22, %23 : vector<1x128xf32>
    %25 = arith.mulf %20, %20 : vector<16x128xf32>
    %cst_19 = arith.constant dense<0.000000e+00> : vector<128xf32>
    %26 = vector.multi_reduction <add>, %25, %cst_19 [0] : vector<16x128xf32> to vector<128xf32>
    %27 = vector.shape_cast %26 : vector<128xf32> to vector<1x128xf32>
    %cst_20 = arith.constant 6.250000e-02 : f32
    %28 = vector.broadcast %cst_20 : f32 to vector<1x128xf32>
    %29 = arith.mulf %27, %28 : vector<1x128xf32>
    %30 = arith.mulf %24, %24 : vector<1x128xf32>
    %31 = arith.subf %29, %30 : vector<1x128xf32>
    %cst_21 = arith.constant 0.000000e+00 : f32
    %32 = vector.broadcast %cst_21 : f32 to vector<1x128xf32>
    %33 = arith.maximumf %31, %32 : vector<1x128xf32>
    %cst_22 = arith.constant 9.99999974E-6 : f32
    %34 = vector.broadcast %cst_22 : f32 to vector<1x128xf32>
    %35 = arith.addf %33, %34 : vector<1x128xf32>
    %36 = math.rsqrt %35 : vector<1x128xf32>
    %37 = arith.mulf %3, %36 : vector<1x128xf32>
    %38 = arith.mulf %24, %37 : vector<1x128xf32>
    %39 = arith.subf %4, %38 : vector<1x128xf32>
    %40 = vector.broadcast %37 : vector<1x128xf32> to vector<16x128xf32>
    %41 = arith.mulf %20, %40 : vector<16x128xf32>
    %42 = vector.broadcast %39 : vector<1x128xf32> to vector<16x128xf32>
    %43 = arith.addf %41, %42 : vector<16x128xf32>
    %cst_23 = arith.constant 0.000000e+00 : f32
    %44 = vector.broadcast %cst_23 : f32 to vector<16x128xf32>
    %45 = arith.maximumf %43, %44 : vector<16x128xf32>
    %46 = arith.truncf %45 : vector<16x128xf32> to vector<16x128xbf16>
    %cst_24 = arith.constant dense<0.000000e+00> : vector<16x128xf32>
    %47 = tpu.matmul %0, %46, %cst_24 {dimension_numbers = #tpu.dot_dimension_numbers<[1], [0], [0], [1], [0, 0, 1, 1], [], []>} : vector<16x16xbf16>, vector<16x128xbf16>, vector<16x128xf32> -> vector<16x128xf32>
    %48 = arith.truncf %47 : vector<16x128xf32> to vector<16x128xbf16>
    %c0_25 = arith.constant 0 : index
    %c0_26 = arith.constant 0 : index
    %49 = vector.load %arg5[%c0_25, %c0_26] : memref<128x128xbf16, #tpu.memory_space<vmem>>, vector<128x128xbf16>
    %cst_27 = arith.constant dense<0.000000e+00> : vector<16x128xf32>
    %50 = tpu.matmul %48, %49, %cst_27 {dimension_numbers = #tpu.dot_dimension_numbers<[1], [0], [0], [1], [0, 0, 1, 1], [], []>} : vector<16x128xbf16>, vector<128x128xbf16>, vector<16x128xf32> -> vector<16x128xf32>
    %51 = vector.broadcast %5 : vector<1x128xf32> to vector<16x128xf32>
    %52 = arith.addf %50, %51 : vector<16x128xf32>
    %cst_28 = arith.constant 0.000000e+00 : f32
    %53 = vector.broadcast %cst_28 : f32 to vector<16x128xf32>
    %54 = arith.maximumf %52, %53 : vector<16x128xf32>
    %55 = arith.truncf %54 : vector<16x128xf32> to vector<16x128xbf16>
    %c0_29 = arith.constant 0 : index
    %c0_30 = arith.constant 0 : index
    %56 = vector.load %arg6[%c0_29, %c0_30] : memref<128x128xbf16, #tpu.memory_space<vmem>>, vector<128x128xbf16>
    %cst_31 = arith.constant dense<0.000000e+00> : vector<16x128xf32>
    %57 = tpu.matmul %55, %56, %cst_31 {dimension_numbers = #tpu.dot_dimension_numbers<[1], [0], [0], [1], [0, 0, 1, 1], [], []>} : vector<16x128xbf16>, vector<128x128xbf16>, vector<16x128xf32> -> vector<16x128xf32>
    %58 = vector.broadcast %6 : vector<1x128xf32> to vector<16x128xf32>
    %59 = arith.addf %57, %58 : vector<16x128xf32>
    %cst_32 = arith.constant dense<0.000000e+00> : vector<128xf32>
    %60 = vector.multi_reduction <add>, %59, %cst_32 [0] : vector<16x128xf32> to vector<128xf32>
    %61 = vector.shape_cast %60 : vector<128xf32> to vector<1x128xf32>
    %cst_33 = arith.constant 6.250000e-02 : f32
    %62 = vector.broadcast %cst_33 : f32 to vector<1x128xf32>
    %63 = arith.mulf %61, %62 : vector<1x128xf32>
    %64 = arith.mulf %59, %59 : vector<16x128xf32>
    %cst_34 = arith.constant dense<0.000000e+00> : vector<128xf32>
    %65 = vector.multi_reduction <add>, %64, %cst_34 [0] : vector<16x128xf32> to vector<128xf32>
    %66 = vector.shape_cast %65 : vector<128xf32> to vector<1x128xf32>
    %cst_35 = arith.constant 6.250000e-02 : f32
    %67 = vector.broadcast %cst_35 : f32 to vector<1x128xf32>
    %68 = arith.mulf %66, %67 : vector<1x128xf32>
    %69 = arith.mulf %63, %63 : vector<1x128xf32>
    %70 = arith.subf %68, %69 : vector<1x128xf32>
    %cst_36 = arith.constant 0.000000e+00 : f32
    %71 = vector.broadcast %cst_36 : f32 to vector<1x128xf32>
    %72 = arith.maximumf %70, %71 : vector<1x128xf32>
    %cst_37 = arith.constant 9.99999974E-6 : f32
    %73 = vector.broadcast %cst_37 : f32 to vector<1x128xf32>
    %74 = arith.addf %72, %73 : vector<1x128xf32>
    %75 = math.rsqrt %74 : vector<1x128xf32>
    %76 = arith.mulf %7, %75 : vector<1x128xf32>
    %77 = arith.mulf %63, %76 : vector<1x128xf32>
    %78 = arith.subf %8, %77 : vector<1x128xf32>
    %79 = vector.broadcast %76 : vector<1x128xf32> to vector<16x128xf32>
    %80 = arith.mulf %59, %79 : vector<16x128xf32>
    %81 = vector.broadcast %78 : vector<1x128xf32> to vector<16x128xf32>
    %82 = arith.addf %80, %81 : vector<16x128xf32>
    %cst_38 = arith.constant 0.000000e+00 : f32
    %83 = vector.broadcast %cst_38 : f32 to vector<16x128xf32>
    %84 = arith.maximumf %82, %83 : vector<16x128xf32>
    %c0_39 = arith.constant 0 : index
    %c0_40 = arith.constant 0 : index
    %85 = vector.load %arg2[%c0_39, %c0_40] : memref<8x16xbf16, #tpu.memory_space<vmem>>, vector<8x16xbf16>
    %86 = arith.truncf %84 : vector<16x128xf32> to vector<16x128xbf16>
    %cst_41 = arith.constant dense<0.000000e+00> : vector<8x128xf32>
    %87 = tpu.matmul %85, %86, %cst_41 {dimension_numbers = #tpu.dot_dimension_numbers<[1], [0], [0], [1], [0, 0, 1, 1], [], []>} : vector<8x16xbf16>, vector<16x128xbf16>, vector<8x128xf32> -> vector<8x128xf32>
    %88 = arith.truncf %87 : vector<8x128xf32> to vector<8x128xbf16>
    %c0_42 = arith.constant 0 : index
    %c0_43 = arith.constant 0 : index
    %89 = vector.load %arg7[%c0_42, %c0_43] : memref<128x128xbf16, #tpu.memory_space<vmem>>, vector<128x128xbf16>
    %cst_44 = arith.constant dense<0.000000e+00> : vector<8x128xf32>
    %90 = tpu.matmul %88, %89, %cst_44 {dimension_numbers = #tpu.dot_dimension_numbers<[1], [0], [0], [1], [0, 0, 1, 1], [], []>} : vector<8x128xbf16>, vector<128x128xbf16>, vector<8x128xf32> -> vector<8x128xf32>
    %91 = vector.broadcast %9 : vector<1x128xf32> to vector<8x128xf32>
    %92 = arith.addf %90, %91 : vector<8x128xf32>
    %cst_45 = arith.constant dense<0xFF800000> : vector<8xf32>
    %93 = vector.multi_reduction <maximumf>, %92, %cst_45 [1] : vector<8x128xf32> to vector<8xf32>
    %94 = vector.shape_cast %93 : vector<8xf32> to vector<8x1xf32>
    %95 = vector.broadcast %94 : vector<8x1xf32> to vector<8x128xf32>
    %96 = arith.subf %92, %95 : vector<8x128xf32>
    %97 = math.exp %96 : vector<8x128xf32>
    %cst_46 = arith.constant dense<0.000000e+00> : vector<8xf32>
    %98 = vector.multi_reduction <add>, %97, %cst_46 [1] : vector<8x128xf32> to vector<8xf32>
    %99 = vector.shape_cast %98 : vector<8xf32> to vector<8x1xf32>
    %100 = math.log %99 : vector<8x1xf32>
    %101 = arith.addf %94, %100 : vector<8x1xf32>
    %102 = vector.broadcast %101 : vector<8x1xf32> to vector<8x128xf32>
    %103 = arith.subf %92, %102 : vector<8x128xf32>
    %c0_47 = arith.constant 0 : index
    %c0_48 = arith.constant 0 : index
    %104 = vector.load %arg8[%c0_47, %c0_48] : memref<8x128xf32, #tpu.memory_space<vmem>>, vector<8x128xf32>
    tpu.vector_store %arg8[%c0_47, %c0_48], %103 {strides = array<i32>} : memref<8x128xf32, #tpu.memory_space<vmem>>, vector<8x128xf32>,
    return
  }
}

</mosaic_0001>

<llo_original>
// kernel: tpu_custom_call.1
$region0: #{tpu_custom_call.1}
  #allocation0 [shape = 'u32[]', space=smem, size = 0x4, offset = 0x4, fixed_abs, tag = 'smem constant byte address 0x4 - core index']
  #allocation1 [shape = 'u32[144,128]{1,0:T(1,128)}', space=vmem, size = 0x12000, scoped, tag = 'internal scratch']
  %s0 = inlined_call_operand.hbm [shape: bf16[16,128], index: 0, kind: input, shape index: {}]
  %s1 = inlined_call_operand.hbm [shape: bf16[16,16], index: 1, kind: input, shape index: {}]
  %s2 = inlined_call_operand.hbm [shape: bf16[8,16], index: 2, kind: input, shape index: {}]
  %s3 = inlined_call_operand.hbm [shape: f32[16,128], index: 3, kind: input, shape index: {}]
  %s4 = inlined_call_operand.hbm [shape: bf16[128,128], index: 4, kind: input, shape index: {}]
  %s5 = inlined_call_operand.hbm [shape: bf16[128,128], index: 5, kind: input, shape index: {}]
  %s6 = inlined_call_operand.hbm [shape: bf16[128,128], index: 6, kind: input, shape index: {}]
  %s7 = inlined_call_operand.hbm [shape: bf16[128,128], index: 7, kind: input, shape index: {}]
  %s8 = inlined_call_operand.hbm [shape: f32[8,128], index: 8, kind: output, shape index: {}]
  %s9 = sld [smem:[#allocation0]]
  $region74: #{tpu_custom_call.1} parent=0
    _
  %s11 = ssub.s32 1, %s9
  %s12 = scalar_select 0, %s11, %s9
  $region1: #{tpu_custom_call.1} parent=0
    #allocation2 [shape = 'u8[4096]{0}', space=vmem, size = 0x1000, scoped, tag = 'input window, operand 0, single buffered']
    #allocation3 [shape = 's32[1]{0}', space=sflag, size = 0x4, scoped, tag = 'scoped memory for tpu_custom_call.1']
    #allocation4 [shape = 's32[1]{0}', space=sflag, size = 0x4, scoped, tag = 'scoped memory for tpu_custom_call.1']
    #allocation5 [shape = 'u8[4096]{0}', space=vmem, size = 0x1000, scoped, tag = 'input window, operand 1, single buffered']
    #allocation6 [shape = 's32[1]{0}', space=sflag, size = 0x4, scoped, tag = 'scoped memory for tpu_custom_call.1']
    #allocation7 [shape = 'u8[2048]{0}', space=vmem, size = 0x800, scoped, tag = 'input window, operand 2, single buffered']
    #allocation8 [shape = 'u8[8192]{0}', space=vmem, size = 0x2000, scoped, tag = 'input window, operand 3, single buffered']
    #allocation9 [shape = 's32[1]{0}', space=sflag, size = 0x4, scoped, tag = 'scoped memory for tpu_custom_call.1']
    #allocation10 [shape = 'u8[32768]{0}', space=vmem, size = 0x8000, scoped, tag = 'input window, operand 4, single buffered']
    #allocation11 [shape = 'u8[32768]{0}', space=vmem, size = 0x8000, scoped, tag = 'input window, operand 5, single buffered']
    #allocation12 [shape = 's32[1]{0}', space=sflag, size = 0x4, scoped, tag = 'scoped memory for tpu_custom_call.1']
    #allocation13 [shape = 'u8[32768]{0}', space=vmem, size = 0x8000, scoped, tag = 'input window, operand 6, single buffered']
    #allocation14 [shape = 'u8[32768]{0}', space=vmem, size = 0x8000, scoped, tag = 'input window, operand 7, single buffered']
    #allocation15 [shape = 's32[1]{0}', space=sflag, size = 0x4, scoped, tag = 'scoped memory for tpu_custom_call.1']
    #allocation16 [shape = 'u8[4096]{0}', space=vmem, size = 0x1000, scoped, tag = 'output window, operand 0, single buffered']
    %13 = vsyncpa [#allocation3], 0
    %14 = vsyncpa [#allocation6], 0
    %15 = vsyncpa [#allocation9], 0
    %16 = vsyncpa [#allocation12], 0
    %17 = vsyncpa [#allocation15], 0
    %18 = vsyncpa [#allocation4], 0
    // Predicated region
    $region2: #{tpu_custom_call.1} parent=1 // pred_check
      _
    $region3: #{tpu_custom_call.1} parent=1 // pred_check_branch
      %20 = sbr.rel (0) target = $region5
    $region4: #{tpu_custom_call.1} parent=1 // pred_region
      %s22 = ssub.s32 128, 128
      %23 = vsyncadd [#allocation3], %s22
      %s24 = sshll.u32 [#allocation2], 4
      %s25 = int_to_ptr.vmem [resolvable:$true] %s24
      %30 = dma.hbm_to_vmem [thread:$0]  %s0, 128, %s25, [#allocation3], 64, 64, 4
    $region5: #{tpu_custom_call.1} parent=1 // pred_fallthru
      _
    // Predicated region
    $region6: #{tpu_custom_call.1} parent=1 // pred_check
      _
    $region7: #{tpu_custom_call.1} parent=1 // pred_check_branch
      %32 = sbr.rel (0) target = $region9
    $region8: #{tpu_custom_call.1} parent=1 // pred_region
      %s34 = ssub.s32 128, 128
      %35 = vsyncadd [#allocation6], %s34
      %s36 = sshll.u32 [#allocation5], 4
      %s37 = int_to_ptr.vmem [resolvable:$true] %s36
      %42 = dma.hbm_to_vmem [thread:$0]  %s1, 128, %s37, [#allocation6], 64, 64, 4
    $region9: #{tpu_custom_call.1} parent=1 // pred_fallthru
      _
    // Predicated region
    $region10: #{tpu_custom_call.1} parent=1 // pred_check
      _
    $region11: #{tpu_custom_call.1} parent=1 // pred_check_branch
      %44 = sbr.rel (0) target = $region13
    $region12: #{tpu_custom_call.1} parent=1 // pred_region
      %s46 = ssub.s32 64, 64
      %47 = vsyncadd [#allocation6], %s46
      %s49 = sshll.u32 [#allocation7], 4
      %s50 = int_to_ptr.vmem [resolvable:$true] %s49
      %52 = dma.hbm_to_vmem [thread:$0]  %s2, 64, %s50, [#allocation6]
    $region13: #{tpu_custom_call.1} parent=1 // pred_fallthru
      _
    // Predicated region
    $region14: #{tpu_custom_call.1} parent=1 // pred_check
      _
    $region15: #{tpu_custom_call.1} parent=1 // pred_check_branch
      %54 = sbr.rel (0) target = $region17
    $region16: #{tpu_custom_call.1} parent=1 // pred_region
      %s56 = ssub.s32 256, 256
      %57 = vsyncadd [#allocation9], %s56
      %s58 = sshll.u32 [#allocation8], 4
      %s59 = int_to_ptr.vmem [resolvable:$true] %s58
      %64 = dma.hbm_to_vmem [thread:$0]  %s3, 256, %s59, [#allocation9], 128, 128, 8
    $region17: #{tpu_custom_call.1} parent=1 // pred_fallthru
      _
    // Predicated region
    $region18: #{tpu_custom_call.1} parent=1 // pred_check
      _
    $region19: #{tpu_custom_call.1} parent=1 // pred_check_branch
      %66 = sbr.rel (0) target = $region21
    $region20: #{tpu_custom_call.1} parent=1 // pred_region
      %s68 = ssub.s32 1024, 1024
      %69 = vsyncadd [#allocation9], %s68
      %s70 = sshll.u32 [#allocation10], 4
      %s71 = int_to_ptr.vmem [resolvable:$true] %s70
      %76 = dma.hbm_to_vmem [thread:$0]  %s4, 1024, %s71, [#allocation9], 64, 64, 4
    $region21: #{tpu_custom_call.1} parent=1 // pred_fallthru
      _
    // Predicated region
    $region22: #{tpu_custom_call.1} parent=1 // pred_check
      _
    $region23: #{tpu_custom_call.1} parent=1 // pred_check_branch
      %78 = sbr.rel (0) target = $region25
    $region24: #{tpu_custom_call.1} parent=1 // pred_region
      %s80 = ssub.s32 1024, 1024
      %81 = vsyncadd [#allocation12], %s80
      %s82 = sshll.u32 [#allocation11], 4
      %s83 = int_to_ptr.vmem [resolvable:$true] %s82
      %88 = dma.hbm_to_vmem [thread:$0]  %s5, 1024, %s83, [#allocation12], 64, 64, 4
    $region25: #{tpu_custom_call.1} parent=1 // pred_fallthru
      _
    // Predicated region
    $region26: #{tpu_custom_call.1} parent=1 // pred_check
      _
    $region27: #{tpu_custom_call.1} parent=1 // pred_check_branch
      %90 = sbr.rel (0) target = $region29
    $region28: #{tpu_custom_call.1} parent=1 // pred_region
      %s92 = ssub.s32 1024, 1024
      %93 = vsyncadd [#allocation12], %s92
      %s94 = sshll.u32 [#allocation13], 4
      %s95 = int_to_ptr.vmem [resolvable:$true] %s94
      %100 = dma.hbm_to_vmem [thread:$0]  %s6, 1024, %s95, [#allocation12], 64, 64, 4
    $region29: #{tpu_custom_call.1} parent=1 // pred_fallthru
      _
    // Predicated region
    $region30: #{tpu_custom_call.1} parent=1 // pred_check
      _
    $region31: #{tpu_custom_call.1} parent=1 // pred_check_branch
      %102 = sbr.rel (0) target = $region33
    $region32: #{tpu_custom_call.1} parent=1 // pred_region
      %s104 = ssub.s32 1024, 1024
      %105 = vsyncadd [#allocation15], %s104
      %s106 = sshll.u32 [#allocation14], 4
      %s107 = int_to_ptr.vmem [resolvable:$true] %s106
      %112 = dma.hbm_to_vmem [thread:$0]  %s7, 1024, %s107, [#allocation15], 64, 64, 4
    $region33: #{tpu_custom_call.1} parent=1 // pred_fallthru
      _
    // Predicated region
    $region34: #{tpu_custom_call.1} parent=1 // pred_check
      _
    $region35: #{tpu_custom_call.1} parent=1 // pred_check_branch
      %114 = sbr.rel (0) target = $region37
    $region36: #{tpu_custom_call.1} parent=1 // pred_region
      %115 = dma.done [#allocation3], 128
    $region37: #{tpu_custom_call.1} parent=1 // pred_fallthru
      _
    // Predicated region
    $region38: #{tpu_custom_call.1} parent=1 // pred_check
      _
    $region39: #{tpu_custom_call.1} parent=1 // pred_check_branch
      %117 = sbr.rel (0) target = $region41
    $region40: #{tpu_custom_call.1} parent=1 // pred_region
      %118 = dma.done [#allocation6], 128
    $region41: #{tpu_custom_call.1} parent=1 // pred_fallthru
      _
    // Predicated region
    $region42: #{tpu_custom_call.1} parent=1 // pred_check
      _
    $region43: #{tpu_custom_call.1} parent=1 // pred_check_branch
      %120 = sbr.rel (0) target = $region45
    $region44: #{tpu_custom_call.1} parent=1 // pred_region
      %121 = dma.done [#allocation6], 64
    $region45: #{tpu_custom_call.1} parent=1 // pred_fallthru
      _
    // Predicated region
    $region46: #{tpu_custom_call.1} parent=1 // pred_check
      _
    $region47: #{tpu_custom_call.1} parent=1 // pred_check_branch
      %123 = sbr.rel (0) target = $region49
    $region48: #{tpu_custom_call.1} parent=1 // pred_region
      %124 = dma.done [#allocation9], 256
    $region49: #{tpu_custom_call.1} parent=1 // pred_fallthru
      _
    // Predicated region
    $region50: #{tpu_custom_call.1} parent=1 // pred_check
      _
    $region51: #{tpu_custom_call.1} parent=1 // pred_check_branch
      %126 = sbr.rel (0) target = $region53
    $region52: #{tpu_custom_call.1} parent=1 // pred_region
      %127 = dma.done [#allocation9], 1024
    $region53: #{tpu_custom_call.1} parent=1 // pred_fallthru
      _
    // Predicated region
    $region54: #{tpu_custom_call.1} parent=1 // pred_check
      _
    $region55: #{tpu_custom_call.1} parent=1 // pred_check_branch
      %129 = sbr.rel (0) target = $region57
    $region56: #{tpu_custom_call.1} parent=1 // pred_region
      %130 = dma.done [#allocation12], 1024
    $region57: #{tpu_custom_call.1} parent=1 // pred_fallthru
      _
    // Predicated region
    $region58: #{tpu_custom_call.1} parent=1 // pred_check
      _
    $region59: #{tpu_custom_call.1} parent=1 // pred_check_branch
      %132 = sbr.rel (0) target = $region61
    $region60: #{tpu_custom_call.1} parent=1 // pred_region
      %133 = dma.done [#allocation12], 1024
    $region61: #{tpu_custom_call.1} parent=1 // pred_fallthru
      _
    // Predicated region
    $region62: #{tpu_custom_call.1} parent=1 // pred_check
      _
    $region63: #{tpu_custom_call.1} parent=1 // pred_check_branch
      %135 = sbr.rel (0) target = $region65
    $region64: #{tpu_custom_call.1} parent=1 // pred_region
      %136 = dma.done [#allocation15], 1024
    $region65: #{tpu_custom_call.1} parent=1 // pred_fallthru
      _
    %v138 = vld [vmem:[#allocation5] sm:$0xf]
    %v139 = vld [vmem:[#allocation5 + $0x4] sm:$0xf]
    %v140 = vld [vmem:[#allocation8] sm:$0x1]
    %v141 = vld [vmem:[#allocation8 + $0x1] sm:$0x1]
    %v142 = vld [vmem:[#allocation8 + $0x2] sm:$0x1]
    %v143 = vld [vmem:[#allocation8 + $0x3] sm:$0x1]
    %v144 = vld [vmem:[#allocation8 + $0x4] sm:$0x1]
    %v145 = vld [vmem:[#allocation8 + $0x5] sm:$0x1]
    %v146 = vld [vmem:[#allocation8 + $0x6] sm:$0x1]
    %v147 = vld [vmem:[#allocation8 + $0x7] sm:$0x1]
    %v148 = vld [vmem:[#allocation8 + $0x8] sm:$0x1]
    %v149 = vld [vmem:[#allocation2] sm:$0xf]
    %v150 = vld [vmem:[#allocation2 + $0x4] sm:$0xf]
    %v151 = vlaneseq
    %v152 = vshrl.u32 %v151, 7
    %v153 = vsub.s32 0, %v152
    %v154 = vrot.slane %v140, %v153
    %v157 = vunpack.c.l.b16 %v138
    %v158 = vunpack.c.l.b16 %v139
    %v159 = vpack.c.b16 %v158, %v157
    %v162 = vunpack.c.l.b16 %v149
    %v163 = vunpack.c.l.b16 %v150
    %v164 = vpack.c.b16 %v163, %v162
    %vm166 = vcmask 130048
    %v168 = vsel %vm166, %v159, 0
    %170 = vmatprep.subr.bf16.mxu0 0
    %171 = vmatpush1.bf16.msra.mxu0 0
    %172 = vmatprep.subr.bf16.mxu0 0
    %173 = vmatpush1.bf16.msra.mxu0 0
    %174 = vmatprep.subr.bf16.mxu0 0
    %175 = vmatpush1.bf16.msra.mxu0 0
    %176 = vmatprep.subr.bf16.mxu0 0
    %177 = vmatpush1.bf16.msra.mxu0 0
    %178 = vmatprep.subr.bf16.mxu0 0
    %179 = vmatpush1.bf16.msra.mxu0 0
    %180 = vmatprep.subr.bf16.mxu0 0
    %181 = vmatpush1.bf16.msra.mxu0 0
    %182 = vmatprep.subr.bf16.mxu0 0
    %183 = vmatpush1.bf16.msra.mxu0 0
    %184 = vmatprep.subr.bf16.mxu0 0
    %185 = vmatpush1.bf16.msra.mxu0 %v164
    %186 = vmatprep.subr.bf16.mxu0 0
    %187 = vmatpush2.bf16.msra.mxu0 0
    %188 = vmatprep.subr.bf16.mxu0 0
    %189 = vmatpush2.bf16.msra.mxu0 0
    %190 = vmatprep.subr.bf16.mxu0 0
    %191 = vmatpush2.bf16.msra.mxu0 0
    %192 = vmatprep.subr.bf16.mxu0 0
    %193 = vmatpush2.bf16.msra.mxu0 0
    %194 = vmatprep.subr.bf16.mxu0 0
    %195 = vmatpush2.bf16.msra.mxu0 0
    %196 = vmatprep.subr.bf16.mxu0 0
    %197 = vmatpush2.bf16.msra.mxu0 0
    %198 = vmatprep.subr.bf16.mxu0 0
    %199 = vmatpush2.bf16.msra.mxu0 0
    %200 = vmatprep.subr.bf16.mxu0 0
    %201 = vmatpush2.bf16.msra.mxu0 0
    %202 = vmatprep.mubr.bf16.mxu0 0
    %203 = vmatmul.mubr.bf16.gmra.mxu0 %v168
    %v204 = vpop.f32.mrf.mxu0
    %v205 = vadd.f32 %v154, %v204
    %v206 = vpop.f32.mrf.mxu0
    %v207 = vpop.f32.mrf.mxu0
    %v208 = vadd.f32 %v154, %v207
    %v209 = vpop.f32.mrf.mxu0
    %210 = vdwg.mxu0
    %v211 = vmax.f32 %v205, 0.0
    %v212 = vmax.f32 %v208, 0.0
    %v213 = vpack.c.bf16 %v212, %v211
    %v214 = vld [vmem:[#allocation10] sm:$0xf]
    %v215 = vld [vmem:[#allocation10 + $0x4] sm:$0xf]
    %v216 = vld [vmem:[#allocation10 + $0x8] sm:$0xf]
    %v217 = vld [vmem:[#allocation10 + $0xc] sm:$0xf]
    %v218 = vld [vmem:[#allocation10 + $0x10] sm:$0xf]
    %v219 = vld [vmem:[#allocation10 + $0x14] sm:$0xf]
    %v220 = vld [vmem:[#allocation10 + $0x18] sm:$0xf]
    %v221 = vld [vmem:[#allocation10 + $0x1c] sm:$0xf]
    %v222 = vld [vmem:[#allocation10 + $0x20] sm:$0xf]
    %v223 = vld [vmem:[#allocation10 + $0x24] sm:$0xf]
    %v224 = vld [vmem:[#allocation10 + $0x28] sm:$0xf]
    %v225 = vld [vmem:[#allocation10 + $0x2c] sm:$0xf]
    %v226 = vld [vmem:[#allocation10 + $0x30] sm:$0xf]
    %v227 = vld [vmem:[#allocation10 + $0x34] sm:$0xf]
    %v228 = vld [vmem:[#allocation10 + $0x38] sm:$0xf]
    %v229 = vld [vmem:[#allocation10 + $0x3c] sm:$0xf]
    %v230 = vlaneseq
    %v231 = vshrl.u32 %v230, 7
    %v232 = vsub.s32 0, %v231
    %v233 = vrot.slane %v141, %v232
    %v250 = vunpack.c.l.b16 %v214
    %v251 = vunpack.c.l.b16 %v215
    %v252 = vunpack.c.l.b16 %v216
    %v253 = vunpack.c.l.b16 %v217
    %v254 = vunpack.c.l.b16 %v218
    %v255 = vunpack.c.l.b16 %v219
    %v256 = vunpack.c.l.b16 %v220
    %v257 = vunpack.c.l.b16 %v221
    %v258 = vunpack.c.l.b16 %v222
    %v259 = vunpack.c.l.b16 %v223
    %v260 = vunpack.c.l.b16 %v224
    %v261 = vunpack.c.l.b16 %v225
    %v262 = vunpack.c.l.b16 %v226
    %v263 = vunpack.c.l.b16 %v227
    %v264 = vunpack.c.l.b16 %v228
    %v265 = vunpack.c.l.b16 %v229
    %v266 = vpack.c.b16 %v251, %v250
    %v267 = vpack.c.b16 %v253, %v252
    %v268 = vpack.c.b16 %v255, %v254
    %v269 = vpack.c.b16 %v257, %v256
    %v270 = vpack.c.b16 %v259, %v258
    %v271 = vpack.c.b16 %v261, %v260
    %v272 = vpack.c.b16 %v263, %v262
    %v273 = vpack.c.b16 %v265, %v264
    %282 = vmatprep.subr.bf16.mxu0 0
    %283 = vmatpush1.bf16.msra.mxu0 %v273
    %284 = vmatprep.subr.bf16.mxu0 0
    %285 = vmatpush1.bf16.msra.mxu0 %v272
    %286 = vmatprep.subr.bf16.mxu0 0
    %287 = vmatpush1.bf16.msra.mxu0 %v271
    %288 = vmatprep.subr.bf16.mxu0 0
    %289 = vmatpush1.bf16.msra.mxu0 %v270
    %290 = vmatprep.subr.bf16.mxu0 0
    %291 = vmatpush1.bf16.msra.mxu0 %v269
    %292 = vmatprep.subr.bf16.mxu0 0
    %293 = vmatpush1.bf16.msra.mxu0 %v268
    %294 = vmatprep.subr.bf16.mxu0 0
    %295 = vmatpush1.bf16.msra.mxu0 %v267
    %296 = vmatprep.subr.bf16.mxu0 0
    %297 = vmatpush1.bf16.msra.mxu0 %v266
    %298 = vmatprep.subr.bf16.mxu0 0
    %299 = vmatpush2.bf16.msra.mxu0 0
    %300 = vmatprep.subr.bf16.mxu0 0
    %301 = vmatpush2.bf16.msra.mxu0 0
    %302 = vmatprep.subr.bf16.mxu0 0
    %303 = vmatpush2.bf16.msra.mxu0 0
    %304 = vmatprep.subr.bf16.mxu0 0
    %305 = vmatpush2.bf16.msra.mxu0 0
    %306 = vmatprep.subr.bf16.mxu0 0
    %307 = vmatpush2.bf16.msra.mxu0 0
    %308 = vmatprep.subr.bf16.mxu0 0
    %309 = vmatpush2.bf16.msra.mxu0 0
    %310 = vmatprep.subr.bf16.mxu0 0
    %311 = vmatpush2.bf16.msra.mxu0 0
    %312 = vmatprep.subr.bf16.mxu0 0
    %313 = vmatpush2.bf16.msra.mxu0 0
    %314 = vmatprep.mubr.bf16.mxu0 0
    %315 = vmatmul.mubr.bf16.gmra.mxu0 %v213
    %v316 = vpop.f32.mrf.mxu0
    %v317 = vadd.f32 %v233, %v316
    %v318 = vpop.f32.mrf.mxu0
    %v319 = vpop.f32.mrf.mxu0
    %v320 = vadd.f32 %v233, %v319
    %v321 = vpop.f32.mrf.mxu0
    %322 = vdwg.mxu0
    %v323 = vadd.f32 %v317, %v320
    %v324 = vrot.slane %v323, 4
    %v325 = vadd.f32 %v323, %v324
    %v326 = vrot.slane %v325, 2
    %v327 = vadd.f32 %v325, %v326
    %v328 = vrot.slane %v327, 1
    %v329 = vadd.f32 %v327, %v328
    %v330 = vmul.f32 %v329, 0.0625
    %v331 = vmul.f32 %v317, %v317
    %v332 = vmul.f32 %v320, %v320
    %v333 = vadd.f32 %v331, %v332
    %v334 = vrot.slane %v333, 4
    %v335 = vadd.f32 %v333, %v334
    %v336 = vrot.slane %v335, 2
    %v337 = vadd.f32 %v335, %v336
    %v338 = vrot.slane %v337, 1
    %v339 = vadd.f32 %v337, %v338
    %v340 = vmul.f32 %v339, 0.0625
    %v341 = vmul.f32 %v330, %v330
    %v342 = vsub.f32 %v340, %v341
    %v343 = vmax.f32 %v342, 0.0
    %v344 = vadd.f32 %v343, 1e-05
    %v345 = vrsqrt.pop %v344
    %v346 = vmul.f32 %v142, %v345
    %v347 = vmul.f32 %v330, %v346
    %v348 = vsub.f32 %v143, %v347
    %v349 = vlaneseq
    %v350 = vshrl.u32 %v349, 7
    %v351 = vsub.s32 0, %v350
    %v352 = vrot.slane %v346, %v351
    %v353 = vmul.f32 %v317, %v352
    %v354 = vmul.f32 %v320, %v352
    %v355 = vlaneseq
    %v356 = vshrl.u32 %v355, 7
    %v357 = vsub.s32 0, %v356
    %v358 = vrot.slane %v348, %v357
    %v359 = vadd.f32 %v353, %v358
    %v360 = vadd.f32 %v354, %v358
    %v361 = vmax.f32 %v359, 0.0
    %v362 = vmax.f32 %v360, 0.0
    %v363 = vpack.c.bf16 %v362, %v361
    %364 = vmatprep.subr.bf16.mxu0 0
    %365 = vmatpush1.bf16.msra.mxu0 0
    %366 = vmatprep.subr.bf16.mxu0 0
    %367 = vmatpush1.bf16.msra.mxu0 0
    %368 = vmatprep.subr.bf16.mxu0 0
    %369 = vmatpush1.bf16.msra.mxu0 0
    %370 = vmatprep.subr.bf16.mxu0 0
    %371 = vmatpush1.bf16.msra.mxu0 0
    %372 = vmatprep.subr.bf16.mxu0 0
    %373 = vmatpush1.bf16.msra.mxu0 0
    %374 = vmatprep.subr.bf16.mxu0 0
    %375 = vmatpush1.bf16.msra.mxu0 0
    %376 = vmatprep.subr.bf16.mxu0 0
    %377 = vmatpush1.bf16.msra.mxu0 0
    %378 = vmatprep.subr.bf16.mxu0 0
    %379 = vmatpush1.bf16.msra.mxu0 %v363
    %380 = vmatprep.subr.bf16.mxu0 0
    %381 = vmatpush2.bf16.msra.mxu0 0
    %382 = vmatprep.subr.bf16.mxu0 0
    %383 = vmatpush2.bf16.msra.mxu0 0
    %384 = vmatprep.subr.bf16.mxu0 0
    %385 = vmatpush2.bf16.msra.mxu0 0
    %386 = vmatprep.subr.bf16.mxu0 0
    %387 = vmatpush2.bf16.msra.mxu0 0
    %388 = vmatprep.subr.bf16.mxu0 0
    %389 = vmatpush2.bf16.msra.mxu0 0
    %390 = vmatprep.subr.bf16.mxu0 0
    %391 = vmatpush2.bf16.msra.mxu0 0
    %392 = vmatprep.subr.bf16.mxu0 0
    %393 = vmatpush2.bf16.msra.mxu0 0
    %394 = vmatprep.subr.bf16.mxu0 0
    %395 = vmatpush2.bf16.msra.mxu0 0
    %396 = vmatprep.mubr.bf16.mxu0 0
    %397 = vmatmul.mubr.bf16.gmra.mxu0 %v168
    %v398 = vpop.f32.mrf.mxu0
    %v399 = vadd.f32 0.0, %v398
    %v400 = vpop.f32.mrf.mxu0
    %v401 = vpop.f32.mrf.mxu0
    %v402 = vadd.f32 0.0, %v401
    %v403 = vpop.f32.mrf.mxu0
    %404 = vdwg.mxu0
    %v405 = vpack.c.bf16 %v402, %v399
    %v406 = vld [vmem:[#allocation11] sm:$0xf]
    %v407 = vld [vmem:[#allocation11 + $0x4] sm:$0xf]
    %v408 = vld [vmem:[#allocation11 + $0x8] sm:$0xf]
    %v409 = vld [vmem:[#allocation11 + $0xc] sm:$0xf]
    %v410 = vld [vmem:[#allocation11 + $0x10] sm:$0xf]
    %v411 = vld [vmem:[#allocation11 + $0x14] sm:$0xf]
    %v412 = vld [vmem:[#allocation11 + $0x18] sm:$0xf]
    %v413 = vld [vmem:[#allocation11 + $0x1c] sm:$0xf]
    %v414 = vld [vmem:[#allocation11 + $0x20] sm:$0xf]
    %v415 = vld [vmem:[#allocation11 + $0x24] sm:$0xf]
    %v416 = vld [vmem:[#allocation11 + $0x28] sm:$0xf]
    %v417 = vld [vmem:[#allocation11 + $0x2c] sm:$0xf]
    %v418 = vld [vmem:[#allocation11 + $0x30] sm:$0xf]
    %v419 = vld [vmem:[#allocation11 + $0x34] sm:$0xf]
    %v420 = vld [vmem:[#allocation11 + $0x38] sm:$0xf]
    %v421 = vld [vmem:[#allocation11 + $0x3c] sm:$0xf]
    %v422 = vlaneseq
    %v423 = vshrl.u32 %v422, 7
    %v424 = vsub.s32 0, %v423
    %v425 = vrot.slane %v144, %v424
    %v442 = vunpack.c.l.b16 %v406
    %v443 = vunpack.c.l.b16 %v407
    %v444 = vunpack.c.l.b16 %v408
    %v445 = vunpack.c.l.b16 %v409
    %v446 = vunpack.c.l.b16 %v410
    %v447 = vunpack.c.l.b16 %v411
    %v448 = vunpack.c.l.b16 %v412
    %v449 = vunpack.c.l.b16 %v413
    %v450 = vunpack.c.l.b16 %v414
    %v451 = vunpack.c.l.b16 %v415
    %v452 = vunpack.c.l.b16 %v416
    %v453 = vunpack.c.l.b16 %v417
    %v454 = vunpack.c.l.b16 %v418
    %v455 = vunpack.c.l.b16 %v419
    %v456 = vunpack.c.l.b16 %v420
    %v457 = vunpack.c.l.b16 %v421
    %v458 = vpack.c.b16 %v443, %v442
    %v459 = vpack.c.b16 %v445, %v444
    %v460 = vpack.c.b16 %v447, %v446
    %v461 = vpack.c.b16 %v449, %v448
    %v462 = vpack.c.b16 %v451, %v450
    %v463 = vpack.c.b16 %v453, %v452
    %v464 = vpack.c.b16 %v455, %v454
    %v465 = vpack.c.b16 %v457, %v456
    %474 = vmatprep.subr.bf16.mxu0 0
    %475 = vmatpush1.bf16.msra.mxu0 %v465
    %476 = vmatprep.subr.bf16.mxu0 0
    %477 = vmatpush1.bf16.msra.mxu0 %v464
    %478 = vmatprep.subr.bf16.mxu0 0
    %479 = vmatpush1.bf16.msra.mxu0 %v463
    %480 = vmatprep.subr.bf16.mxu0 0
    %481 = vmatpush1.bf16.msra.mxu0 %v462
    %482 = vmatprep.subr.bf16.mxu0 0
    %483 = vmatpush1.bf16.msra.mxu0 %v461
    %484 = vmatprep.subr.bf16.mxu0 0
    %485 = vmatpush1.bf16.msra.mxu0 %v460
    %486 = vmatprep.subr.bf16.mxu0 0
    %487 = vmatpush1.bf16.msra.mxu0 %v459
    %488 = vmatprep.subr.bf16.mxu0 0
    %489 = vmatpush1.bf16.msra.mxu0 %v458
    %490 = vmatprep.subr.bf16.mxu0 0
    %491 = vmatpush2.bf16.msra.mxu0 0
    %492 = vmatprep.subr.bf16.mxu0 0
    %493 = vmatpush2.bf16.msra.mxu0 0
    %494 = vmatprep.subr.bf16.mxu0 0
    %495 = vmatpush2.bf16.msra.mxu0 0
    %496 = vmatprep.subr.bf16.mxu0 0
    %497 = vmatpush2.bf16.msra.mxu0 0
    %498 = vmatprep.subr.bf16.mxu0 0
    %499 = vmatpush2.bf16.msra.mxu0 0
    %500 = vmatprep.subr.bf16.mxu0 0
    %501 = vmatpush2.bf16.msra.mxu0 0
    %502 = vmatprep.subr.bf16.mxu0 0
    %503 = vmatpush2.bf16.msra.mxu0 0
    %504 = vmatprep.subr.bf16.mxu0 0
    %505 = vmatpush2.bf16.msra.mxu0 0
    %506 = vmatprep.mubr.bf16.mxu0 0
    %507 = vmatmul.mubr.bf16.gmra.mxu0 %v405
    %v508 = vpop.f32.mrf.mxu0
    %v509 = vadd.f32 %v425, %v508
    %v510 = vpop.f32.mrf.mxu0
    %v511 = vpop.f32.mrf.mxu0
    %v512 = vadd.f32 %v425, %v511
    %v513 = vpop.f32.mrf.mxu0
    %514 = vdwg.mxu0
    %v515 = vmax.f32 %v509, 0.0
    %v516 = vmax.f32 %v512, 0.0
    %v517 = vpack.c.bf16 %v516, %v515
    %v518 = vld [vmem:[#allocation13] sm:$0xf]
    %v519 = vld [vmem:[#allocation13 + $0x4] sm:$0xf]
    %v520 = vld [vmem:[#allocation13 + $0x8] sm:$0xf]
    %v521 = vld [vmem:[#allocation13 + $0xc] sm:$0xf]
    %v522 = vld [vmem:[#allocation13 + $0x10] sm:$0xf]
    %v523 = vld [vmem:[#allocation13 + $0x14] sm:$0xf]
    %v524 = vld [vmem:[#allocation13 + $0x18] sm:$0xf]
    %v525 = vld [vmem:[#allocation13 + $0x1c] sm:$0xf]
    %v526 = vld [vmem:[#allocation13 + $0x20] sm:$0xf]
    %v527 = vld [vmem:[#allocation13 + $0x24] sm:$0xf]
    %v528 = vld [vmem:[#allocation13 + $0x28] sm:$0xf]
    %v529 = vld [vmem:[#allocation13 + $0x2c] sm:$0xf]
    %v530 = vld [vmem:[#allocation13 + $0x30] sm:$0xf]
    %v531 = vld [vmem:[#allocation13 + $0x34] sm:$0xf]
    %v532 = vld [vmem:[#allocation13 + $0x38] sm:$0xf]
    %v533 = vld [vmem:[#allocation13 + $0x3c] sm:$0xf]
    %v534 = vlaneseq
    %v535 = vshrl.u32 %v534, 7
    %v536 = vsub.s32 0, %v535
    %v537 = vrot.slane %v145, %v536
    %v554 = vunpack.c.l.b16 %v518
    %v555 = vunpack.c.l.b16 %v519
    %v556 = vunpack.c.l.b16 %v520
    %v557 = vunpack.c.l.b16 %v521
    %v558 = vunpack.c.l.b16 %v522
    %v559 = vunpack.c.l.b16 %v523
    %v560 = vunpack.c.l.b16 %v524
    %v561 = vunpack.c.l.b16 %v525
    %v562 = vunpack.c.l.b16 %v526
    %v563 = vunpack.c.l.b16 %v527
    %v564 = vunpack.c.l.b16 %v528
    %v565 = vunpack.c.l.b16 %v529
    %v566 = vunpack.c.l.b16 %v530
    %v567 = vunpack.c.l.b16 %v531
    %v568 = vunpack.c.l.b16 %v532
    %v569 = vunpack.c.l.b16 %v533
    %v570 = vpack.c.b16 %v555, %v554
    %v571 = vpack.c.b16 %v557, %v556
    %v572 = vpack.c.b16 %v559, %v558
    %v573 = vpack.c.b16 %v561, %v560
    %v574 = vpack.c.b16 %v563, %v562
    %v575 = vpack.c.b16 %v565, %v564
    %v576 = vpack.c.b16 %v567, %v566
    %v577 = vpack.c.b16 %v569, %v568
    %586 = vmatprep.subr.bf16.mxu0 0
    %587 = vmatpush1.bf16.msra.mxu0 %v577
    %588 = vmatprep.subr.bf16.mxu0 0
    %589 = vmatpush1.bf16.msra.mxu0 %v576
    %590 = vmatprep.subr.bf16.mxu0 0
    %591 = vmatpush1.bf16.msra.mxu0 %v575
    %592 = vmatprep.subr.bf16.mxu0 0
    %593 = vmatpush1.bf16.msra.mxu0 %v574
    %594 = vmatprep.subr.bf16.mxu0 0
    %595 = vmatpush1.bf16.msra.mxu0 %v573
    %596 = vmatprep.subr.bf16.mxu0 0
    %597 = vmatpush1.bf16.msra.mxu0 %v572
    %598 = vmatprep.subr.bf16.mxu0 0
    %599 = vmatpush1.bf16.msra.mxu0 %v571
    %600 = vmatprep.subr.bf16.mxu0 0
    %601 = vmatpush1.bf16.msra.mxu0 %v570
    %602 = vmatprep.subr.bf16.mxu0 0
    %603 = vmatpush2.bf16.msra.mxu0 0
    %604 = vmatprep.subr.bf16.mxu0 0
    %605 = vmatpush2.bf16.msra.mxu0 0
    %606 = vmatprep.subr.bf16.mxu0 0
    %607 = vmatpush2.bf16.msra.mxu0 0
    %608 = vmatprep.subr.bf16.mxu0 0
    %609 = vmatpush2.bf16.msra.mxu0 0
    %610 = vmatprep.subr.bf16.mxu0 0
    %611 = vmatpush2.bf16.msra.mxu0 0
    %612 = vmatprep.subr.bf16.mxu0 0
    %613 = vmatpush2.bf16.msra.mxu0 0
    %614 = vmatprep.subr.bf16.mxu0 0
    %615 = vmatpush2.bf16.msra.mxu0 0
    %616 = vmatprep.subr.bf16.mxu0 0
    %617 = vmatpush2.bf16.msra.mxu0 0
    %618 = vmatprep.mubr.bf16.mxu0 0
    %619 = vmatmul.mubr.bf16.gmra.mxu0 %v517
    %v620 = vpop.f32.mrf.mxu0
    %v621 = vadd.f32 %v537, %v620
    %v622 = vpop.f32.mrf.mxu0
    %v623 = vpop.f32.mrf.mxu0
    %v624 = vadd.f32 %v537, %v623
    %v625 = vpop.f32.mrf.mxu0
    %626 = vdwg.mxu0
    %v627 = vadd.f32 %v621, %v624
    %v628 = vrot.slane %v627, 4
    %v629 = vadd.f32 %v627, %v628
    %v630 = vrot.slane %v629, 2
    %v631 = vadd.f32 %v629, %v630
    %v632 = vrot.slane %v631, 1
    %v633 = vadd.f32 %v631, %v632
    %v634 = vmul.f32 %v633, 0.0625
    %v635 = vmul.f32 %v621, %v621
    %v636 = vmul.f32 %v624, %v624
    %v637 = vadd.f32 %v635, %v636
    %v638 = vrot.slane %v637, 4
    %v639 = vadd.f32 %v637, %v638
    %v640 = vrot.slane %v639, 2
    %v641 = vadd.f32 %v639, %v640
    %v642 = vrot.slane %v641, 1
    %v643 = vadd.f32 %v641, %v642
    %v644 = vmul.f32 %v643, 0.0625
    %v645 = vmul.f32 %v634, %v634
    %v646 = vsub.f32 %v644, %v645
    %v647 = vmax.f32 %v646, 0.0
    %v648 = vadd.f32 %v647, 1e-05
    %v649 = vrsqrt.pop %v648
    %v650 = vmul.f32 %v146, %v649
    %v651 = vmul.f32 %v634, %v650
    %v652 = vsub.f32 %v147, %v651
    %v653 = vlaneseq
    %v654 = vshrl.u32 %v653, 7
    %v655 = vsub.s32 0, %v654
    %v656 = vrot.slane %v650, %v655
    %v657 = vmul.f32 %v621, %v656
    %v658 = vmul.f32 %v624, %v656
    %v659 = vlaneseq
    %v660 = vshrl.u32 %v659, 7
    %v661 = vsub.s32 0, %v660
    %v662 = vrot.slane %v652, %v661
    %v663 = vadd.f32 %v657, %v662
    %v664 = vadd.f32 %v658, %v662
    %v665 = vmax.f32 %v663, 0.0
    %v666 = vmax.f32 %v664, 0.0
    %v667 = vld [vmem:[#allocation7] sm:$0xf]
    %v668 = vpack.c.bf16 %v666, %v665
    %v670 = vsel %vm166, %v667, 0
    %672 = vmatprep.subr.bf16.mxu0 0
    %673 = vmatpush1.bf16.msra.mxu0 0
    %674 = vmatprep.subr.bf16.mxu0 0
    %675 = vmatpush1.bf16.msra.mxu0 0
    %676 = vmatprep.subr.bf16.mxu0 0
    %677 = vmatpush1.bf16.msra.mxu0 0
    %678 = vmatprep.subr.bf16.mxu0 0
    %679 = vmatpush1.bf16.msra.mxu0 0
    %680 = vmatprep.subr.bf16.mxu0 0
    %681 = vmatpush1.bf16.msra.mxu0 0
    %682 = vmatprep.subr.bf16.mxu0 0
    %683 = vmatpush1.bf16.msra.mxu0 0
    %684 = vmatprep.subr.bf16.mxu0 0
    %685 = vmatpush1.bf16.msra.mxu0 0
    %686 = vmatprep.subr.bf16.mxu0 0
    %687 = vmatpush1.bf16.msra.mxu0 %v668
    %688 = vmatprep.subr.bf16.mxu0 0
    %689 = vmatpush2.bf16.msra.mxu0 0
    %690 = vmatprep.subr.bf16.mxu0 0
    %691 = vmatpush2.bf16.msra.mxu0 0
    %692 = vmatprep.subr.bf16.mxu0 0
    %693 = vmatpush2.bf16.msra.mxu0 0
    %694 = vmatprep.subr.bf16.mxu0 0
    %695 = vmatpush2.bf16.msra.mxu0 0
    %696 = vmatprep.subr.bf16.mxu0 0
    %697 = vmatpush2.bf16.msra.mxu0 0
    %698 = vmatprep.subr.bf16.mxu0 0
    %699 = vmatpush2.bf16.msra.mxu0 0
    %700 = vmatprep.subr.bf16.mxu0 0
    %701 = vmatpush2.bf16.msra.mxu0 0
    %702 = vmatprep.subr.bf16.mxu0 0
    %703 = vmatpush2.bf16.msra.mxu0 0
    %704 = vmatprep.mubr.bf16.mxu0 0
    %705 = vmatmul.mubr.bf16.gmra.mxu0 %v670
    %v706 = vpop.f32.mrf.mxu0
    %v707 = vadd.f32 0.0, %v706
    %v708 = vpop.f32.mrf.mxu0
    %v709 = vpop.f32.mrf.mxu0
    %v710 = vpop.f32.mrf.mxu0
    %711 = vdwg.mxu0
    %v712 = vpack.c.bf16 %v707, %v707
    %v713 = vld [vmem:[#allocation14] sm:$0xf]
    %v714 = vld [vmem:[#allocation14 + $0x4] sm:$0xf]
    %v715 = vld [vmem:[#allocation14 + $0x8] sm:$0xf]
    %v716 = vld [vmem:[#allocation14 + $0xc] sm:$0xf]
    %v717 = vld [vmem:[#allocation14 + $0x10] sm:$0xf]
    %v718 = vld [vmem:[#allocation14 + $0x14] sm:$0xf]
    %v719 = vld [vmem:[#allocation14 + $0x18] sm:$0xf]
    %v720 = vld [vmem:[#allocation14 + $0x1c] sm:$0xf]
    %v721 = vld [vmem:[#allocation14 + $0x20] sm:$0xf]
    %v722 = vld [vmem:[#allocation14 + $0x24] sm:$0xf]
    %v723 = vld [vmem:[#allocation14 + $0x28] sm:$0xf]
    %v724 = vld [vmem:[#allocation14 + $0x2c] sm:$0xf]
    %v725 = vld [vmem:[#allocation14 + $0x30] sm:$0xf]
    %v726 = vld [vmem:[#allocation14 + $0x34] sm:$0xf]
    %v727 = vld [vmem:[#allocation14 + $0x38] sm:$0xf]
    %v728 = vld [vmem:[#allocation14 + $0x3c] sm:$0xf]
    %v729 = vlaneseq
    %v730 = vshrl.u32 %v729, 7
    %v731 = vsub.s32 0, %v730
    %v732 = vrot.slane %v148, %v731
    %v749 = vunpack.c.l.b16 %v713
    %v750 = vunpack.c.l.b16 %v714
    %v751 = vunpack.c.l.b16 %v715
    %v752 = vunpack.c.l.b16 %v716
    %v753 = vunpack.c.l.b16 %v717
    %v754 = vunpack.c.l.b16 %v718
    %v755 = vunpack.c.l.b16 %v719
    %v756 = vunpack.c.l.b16 %v720
    %v757 = vunpack.c.l.b16 %v721
    %v758 = vunpack.c.l.b16 %v722
    %v759 = vunpack.c.l.b16 %v723
    %v760 = vunpack.c.l.b16 %v724
    %v761 = vunpack.c.l.b16 %v725
    %v762 = vunpack.c.l.b16 %v726
    %v763 = vunpack.c.l.b16 %v727
    %v764 = vunpack.c.l.b16 %v728
    %v765 = vpack.c.b16 %v750, %v749
    %v766 = vpack.c.b16 %v752, %v751
    %v767 = vpack.c.b16 %v754, %v753
    %v768 = vpack.c.b16 %v756, %v755
    %v769 = vpack.c.b16 %v758, %v757
    %v770 = vpack.c.b16 %v760, %v759
    %v771 = vpack.c.b16 %v762, %v761
    %v772 = vpack.c.b16 %v764, %v763
    %781 = vmatprep.subr.bf16.mxu0 0
    %782 = vmatpush1.bf16.msra.mxu0 %v772
    %783 = vmatprep.subr.bf16.mxu0 0
    %784 = vmatpush1.bf16.msra.mxu0 %v771
    %785 = vmatprep.subr.bf16.mxu0 0
    %786 = vmatpush1.bf16.msra.mxu0 %v770
    %787 = vmatprep.subr.bf16.mxu0 0
    %788 = vmatpush1.bf16.msra.mxu0 %v769
    %789 = vmatprep.subr.bf16.mxu0 0
    %790 = vmatpush1.bf16.msra.mxu0 %v768
    %791 = vmatprep.subr.bf16.mxu0 0
    %792 = vmatpush1.bf16.msra.mxu0 %v767
    %793 = vmatprep.subr.bf16.mxu0 0
    %794 = vmatpush1.bf16.msra.mxu0 %v766
    %795 = vmatprep.subr.bf16.mxu0 0
    %796 = vmatpush1.bf16.msra.mxu0 %v765
    %797 = vmatprep.subr.bf16.mxu0 0
    %798 = vmatpush2.bf16.msra.mxu0 0
    %799 = vmatprep.subr.bf16.mxu0 0
    %800 = vmatpush2.bf16.msra.mxu0 0
    %801 = vmatprep.subr.bf16.mxu0 0
    %802 = vmatpush2.bf16.msra.mxu0 0
    %803 = vmatprep.subr.bf16.mxu0 0
    %804 = vmatpush2.bf16.msra.mxu0 0
    %805 = vmatprep.subr.bf16.mxu0 0
    %806 = vmatpush2.bf16.msra.mxu0 0
    %807 = vmatprep.subr.bf16.mxu0 0
    %808 = vmatpush2.bf16.msra.mxu0 0
    %809 = vmatprep.subr.bf16.mxu0 0
    %810 = vmatpush2.bf16.msra.mxu0 0
    %811 = vmatprep.subr.bf16.mxu0 0
    %812 = vmatpush2.bf16.msra.mxu0 0
    %813 = vmatprep.mubr.bf16.mxu0 0
    %814 = vmatmul.mubr.bf16.gmra.mxu0 %v712
    %v815 = vpop.f32.mrf.mxu0
    %v816 = vadd.f32 %v732, %v815
    %v817 = vpop.f32.mrf.mxu0
    %v818 = vpop.f32.mrf.mxu0
    %v819 = vpop.f32.mrf.mxu0
    %820 = vdwg.mxu0
    %821 = vmax.xlane.f32.xlu0 %v816
    %v822 = vpop.xlane.xlu0 %821
    %v823 = vsub.f32 %v816, %v822
    %v824 = vmul.f32 %v823, 1.442695
    %v825 = vpow.pop %v824
    %826 = vadd.xlane.f32.xlu0 %v825
    %v827 = vpop.xlane.xlu0 %826
    %v828 = vlog2.pop %v827
    %v829 = vmul.f32 %v828, 0.6931472
    %v830 = vadd.f32 %v822, %v829
    %v831 = vsub.f32 %v816, %v830
    %832 = vst [vmem:[#allocation16] sm:$0xff] %v831
    // Predicated region
    $region66: #{tpu_custom_call.1} parent=1 // pred_check
      _
    $region67: #{tpu_custom_call.1} parent=1 // pred_check_branch
      %834 = sbr.rel (0) target = $region69
    $region68: #{tpu_custom_call.1} parent=1 // pred_region
      %s836 = ssub.s32 128, 128
      %837 = vsyncadd [#allocation4], %s836
      %s839 = sshll.u32 [#allocation16], 4
      %s840 = int_to_ptr.vmem [resolvable:$true] %s839
      %842 = dma.vmem_to_hbm [thread:$0]  %s840, 128, %s8, [#allocation4]
    $region69: #{tpu_custom_call.1} parent=1 // pred_fallthru
      _
    // Predicated region
    $region70: #{tpu_custom_call.1} parent=1 // pred_check
      _
    $region71: #{tpu_custom_call.1} parent=1 // pred_check_branch
      %844 = sbr.rel (0) target = $region73
    $region72: #{tpu_custom_call.1} parent=1 // pred_region
      %845 = dma.done [#allocation4], 128
    $region73: #{tpu_custom_call.1} parent=1 // pred_fallthru
      _
    %846 = vsyncpa [#allocation3], 1
    %847 = vsyncpa [#allocation6], 1
    %848 = vsyncpa [#allocation9], 1
    %849 = vsyncpa [#allocation12], 1
    %850 = vsyncpa [#allocation15], 1
    %851 = vsyncpa [#allocation4], 1

</llo_original>
